<compile_context>
chip_gen: v6e
topology: v6e:2x2x1
jax: 0.10.0
libtpu: 0.0.40
codegen_flags: <defaults>
</compile_context>

<pallas_src>
import functools

import jax
import jax.numpy as jnp
from jax import lax
from jax.experimental import pallas as pl


def _round_up8(n):
    return (n + 7) // 8 * 8


def _fused_rnn_kernel(x_ref, w_ref, out_ref, *, T, B, I, H, O,
                      off_bias, off_wf):
    """Fused fc1(RNN) -> ReLU -> fc2(RNN) forward, single invocation.

    x_ref:   (T*B, I)  time-major input, flattened over (T, B)
    w_ref:   packed weight slab (rows, C) with C = O + H:
               rows [0, I)                : Wx   = [0 | Wih1^T]
               row  off_bias              : bias = [b2 | b1]    (b = b_ih+b_hh)
               rows [off_wf, off_wf+2C)   : W_fused (see below)
    out_ref: (T*B, O)  fc2 output sequence (per-step dense stores)

    Fused state z = [h2 | h1] (B, C).  Per step:
      fin = [z | relu(z)]                                   (B, 2C)
      z'  = tanh(fin @ W_fused + pre[s])                    (B, C)
    with W_fused rows: h2-part -> [Whh2^T|0], h1-part -> [0|Whh1^T],
    relu(h2)-part -> 0, relu(h1)-part -> [Wih2^T|0].
    """
    C = H + O

    x = x_ref[...]                                      # (T*B, I)
    wx = w_ref[0:I, :]                                  # (I, C)
    bias = w_ref[off_bias:off_bias + 1, :]              # (1, C)
    wf = w_ref[off_wf:off_wf + 2 * C, :]                # (2C, C)

    # Hoisted layer-1 input projection over ALL timesteps at once.
    # Layer-2 columns of `pre` are simply b2 (Wx has zeros there).
    pre = jnp.dot(x, wx, preferred_element_type=jnp.float32) + bias   # (T*B, C)

    # Step 0:  h1_0 = tanh(pre1_0),  h2_{-1} = 0  (mask layer-2 columns).
    lane = lax.broadcasted_iota(jnp.int32, (B, C), 1)
    z = jnp.where(lane < O, 0.0, jnp.tanh(pre[0:B, :]))                # [h2 | h1]

    # Skewed fused recurrence: combined step s produces layer-1 state h1_s
    # (columns O:) and layer-2 output h2_{s-1} (columns :O).  Trip count is
    # tiny & static -> unrolled at trace time; ONE matmul + ONE tanh per step.
    for s in range(1, T + 1):
        fin = jnp.concatenate([z, jnp.maximum(z, 0.0)], axis=-1)       # (B, 2C)
        # Last step only needs the layer-2 addend (= b2), identical in every
        # block of `pre`, so reuse block 0; its layer-1 result is discarded.
        blk = s if s < T else 0
        z = jnp.tanh(jnp.dot(fin, wf, preferred_element_type=jnp.float32)
                     + pre[blk * B:(blk + 1) * B, :])
        out_ref[(s - 1) * B:s * B, :] = z[:, :O]                       # h2_{s-1}


def rev1_forward(x, packed, *, hidden_size, output_size):
    """Forward pass of rev1: fc1 RNN -> ReLU -> fc2 RNN.

    x: (T, B, I) float32, time-major (PyTorch nn.RNN default layout).
    returns: (output (T, B, O), h_n (1, B, O)) matching nn.RNN's return.
    """
    T, B, I = x.shape
    H, O = hidden_size, output_size
    off_bias = _round_up8(I)
    off_wf = off_bias + 8

    x_flat = x.reshape(T * B, I).astype(jnp.float32)

    kernel = functools.partial(_fused_rnn_kernel, T=T, B=B, I=I, H=H, O=O,
                               off_bias=off_bias, off_wf=off_wf)

    # No grid: every operand is a whole-array VMEM block (few KiB total),
    # so there is zero pipeline/step overhead and only two input DMAs.
    out_flat = pl.pallas_call(
        kernel,
        out_shape=jax.ShapeDtypeStruct((T * B, O), jnp.float32),
    )(x_flat, packed)

    out = out_flat.reshape(T, B, O)
    return out, out[-1:]                                 # h_n == last timestep


class Rev1Pallas:
    """JAX/Pallas port of the rev1 module (fc1: RNN -> ReLU -> fc2: RNN)."""

    def __init__(self, input_size, hidden_size, output_size, key):
        def uniform(key, shape, bound):
            return jax.random.uniform(key, shape, jnp.float32, -bound, bound)

        k = jax.random.split(key, 8)
        bd1 = 1.0 / jnp.sqrt(hidden_size)
        bd2 = 1.0 / jnp.sqrt(output_size)
        # fc1: nn.RNN(input_size, hidden_size)
        self.w_ih1 = uniform(k[0], (hidden_size, input_size), bd1)
        self.w_hh1 = uniform(k[1], (hidden_size, hidden_size), bd1)
        self.b_ih1 = uniform(k[2], (hidden_size,), bd1)
        self.b_hh1 = uniform(k[3], (hidden_size,), bd1)
        # fc2: nn.RNN(hidden_size, output_size)
        self.w_ih2 = uniform(k[4], (output_size, hidden_size), bd2)
        self.w_hh2 = uniform(k[5], (output_size, output_size), bd2)
        self.b_ih2 = uniform(k[6], (output_size,), bd2)
        self.b_hh2 = uniform(k[7], (output_size,), bd2)

        # ---- One-time weight packing (out of the jitted hot path). ----
        f32 = jnp.float32
        H, O, I = hidden_size, output_size, input_size
        C = O + H
        # Input-projection block: x @ [0 | Wih1^T]  (layer-2 cols stay 0).
        wx = jnp.concatenate([jnp.zeros((I, O), f32), self.w_ih1.T], axis=1)
        # Folded biases, output-column order [layer-2 | layer-1].
        bias_row = jnp.concatenate([self.b_ih2 + self.b_hh2,
                                    self.b_ih1 + self.b_hh1])          # (C,)
        # Fused recurrent block, input-row order [h2 | h1 | relu(h2) | relu(h1)].
        w_fused = jnp.concatenate([
            jnp.concatenate([self.w_hh2.T, jnp.zeros((O, H), f32)], axis=1),
            jnp.concatenate([jnp.zeros((H, O), f32), self.w_hh1.T], axis=1),
            jnp.zeros((O, C), f32),
            jnp.concatenate([self.w_ih2.T, jnp.zeros((H, H), f32)], axis=1),
        ], axis=0)                                                      # (2C, C)

        off_bias = _round_up8(I)
        off_wf = off_bias + 8
        rows = off_wf + _round_up8(2 * C)
        packed = jnp.zeros((rows, C), f32)
        packed = packed.at[0:I, :].set(wx)
        packed = packed.at[off_bias, :].set(bias_row)
        packed = packed.at[off_wf:off_wf + 2 * C, :].set(w_fused)
        self.packed = packed

        self._forward = jax.jit(functools.partial(
            rev1_forward, hidden_size=hidden_size, output_size=output_size))

    def __call__(self, x):
        return self._forward(x, self.packed)


def _reference(model, x):
    """Plain-JAX reference implementation for a correctness sanity check."""
    def run_rnn(x, w_ih, w_hh, b_ih, b_hh):
        T, B, _ = x.shape
        H = w_ih.shape[0]
        h = jnp.zeros((B, H), jnp.float32)
        outs = []
        for t in range(T):
            h = jnp.tanh(x[t] @ w_ih.T + b_ih + h @ w_hh.T + b_hh)
            outs.append(h)
        return jnp.stack(outs, 0)

    h1 = jnp.maximum(
        run_rnn(x, model.w_ih1, model.w_hh1, model.b_ih1, model.b_hh1), 0.0)
    out = run_rnn(h1, model.w_ih2, model.w_hh2, model.b_ih2, model.b_hh2)
    return out, out[-1:]


if __name__ == "__main__":
    # Small shapes implied by the forward: time-major sequence input.
    seq_len, batch, input_size, hidden_size, output_size = 8, 4, 16, 32, 16

    key = jax.random.PRNGKey(0)
    k_param, k_x = jax.random.split(key)
    model = Rev1Pallas(input_size, hidden_size, output_size, k_param)

    x = jax.random.normal(k_x, (seq_len, batch, input_size), jnp.float32)

    out, h_n = model(x)
    out = jax.block_until_ready(out)
    h_n = jax.block_until_ready(h_n)

    ref_out, ref_h_n = _reference(model, x)
    assert out.shape == (seq_len, batch, output_size)
    assert h_n.shape == (1, batch, output_size)
    assert jnp.allclose(out, ref_out, atol=1e-5, rtol=1e-5)
    assert jnp.allclose(h_n, ref_h_n, atol=1e-5, rtol=1e-5)

    print("KERNEL_OK")
</pallas_src>

<mosaic_0001>
module attributes {stable_mosaic.version = 11 : i64} {
  func.func @_fused_rnn_kernel(%arg0: memref<32x16xf32, #tpu.memory_space<vmem>>, %arg1: memref<120x48xf32, #tpu.memory_space<vmem>>, %arg2: memref<32x16xf32, #tpu.memory_space<vmem>>) attributes {dimension_semantics = [], scalar_prefetch = 0 : i64, scratch_operands = 0 : i64, tpu.core_type = #tpu.core_type<tc>} {
    %c0 = arith.constant 0 : index
    %c0_0 = arith.constant 0 : index
    %0 = vector.load %arg0[%c0, %c0_0] : memref<32x16xf32, #tpu.memory_space<vmem>>, vector<32x16xf32>
    %c0_1 = arith.constant 0 : index
    %c0_2 = arith.constant 0 : index
    %1 = vector.load %arg1[%c0_1, %c0_2] : memref<120x48xf32, #tpu.memory_space<vmem>>, vector<16x48xf32>
    %c16 = arith.constant 16 : index
    %c0_3 = arith.constant 0 : index
    %2 = vector.load %arg1[%c16, %c0_3] : memref<120x48xf32, #tpu.memory_space<vmem>>, vector<1x48xf32>
    %c24 = arith.constant 24 : index
    %c0_4 = arith.constant 0 : index
    %3 = vector.load %arg1[%c24, %c0_4] : memref<120x48xf32, #tpu.memory_space<vmem>>, vector<96x48xf32>
    %cst = arith.constant dense<0.000000e+00> : vector<32x48xf32>
    %4 = tpu.matmul %0, %1, %cst {dimension_numbers = #tpu.dot_dimension_numbers<[1], [0], [0], [1], [0, 0, 1, 1], [], []>} : vector<32x16xf32>, vector<16x48xf32>, vector<32x48xf32> -> vector<32x48xf32>
    %5 = vector.broadcast %2 : vector<1x48xf32> to vector<32x48xf32>
    %6 = arith.addf %4, %5 : vector<32x48xf32>
    %7 = tpu.iota {dimensions = array<i32: 1>} : vector<4x48xi32>
    %c16_i32 = arith.constant 16 : i32
    %8 = vector.broadcast %c16_i32 : i32 to vector<4x48xi32>
    %9 = arith.cmpi slt, %7, %8 : vector<4x48xi32>
    %10 = vector.extract_strided_slice %6 {offsets = [0, 0], sizes = [4, 48], strides = [1, 1]} : vector<32x48xf32> to vector<4x48xf32>
    %11 = math.tanh %10 : vector<4x48xf32>
    %cst_5 = arith.constant 0.000000e+00 : f32
    %12 = vector.broadcast %cst_5 : f32 to vector<4x48xf32>
    %13 = arith.select %9, %12, %11 : vector<4x48xi1>, vector<4x48xf32>
    %cst_6 = arith.constant 0.000000e+00 : f32
    %14 = vector.broadcast %cst_6 : f32 to vector<4x48xf32>
    %15 = arith.maximumf %13, %14 : vector<4x48xf32>
    %16 = tpu.concatenate %13, %15 in 1 : vector<4x48xf32>, vector<4x48xf32> -> vector<4x96xf32>
    %cst_7 = arith.constant dense<0.000000e+00> : vector<4x48xf32>
    %17 = tpu.matmul %16, %3, %cst_7 {dimension_numbers = #tpu.dot_dimension_numbers<[1], [0], [0], [1], [0, 0, 1, 1], [], []>} : vector<4x96xf32>, vector<96x48xf32>, vector<4x48xf32> -> vector<4x48xf32>
    %18 = vector.extract_strided_slice %6 {offsets = [4, 0], sizes = [4, 48], strides = [1, 1]} : vector<32x48xf32> to vector<4x48xf32>
    %19 = arith.addf %17, %18 : vector<4x48xf32>
    %20 = math.tanh %19 : vector<4x48xf32>
    %21 = vector.extract_strided_slice %20 {offsets = [0, 0], sizes = [4, 16], strides = [1, 1]} : vector<4x48xf32> to vector<4x16xf32>
    %c0_8 = arith.constant 0 : index
    %c0_9 = arith.constant 0 : index
    %22 = vector.load %arg2[%c0_8, %c0_9] : memref<32x16xf32, #tpu.memory_space<vmem>>, vector<4x16xf32>
    tpu.vector_store %arg2[%c0_8, %c0_9], %21 {strides = array<i32>} : memref<32x16xf32, #tpu.memory_space<vmem>>, vector<4x16xf32>,
    %cst_10 = arith.constant 0.000000e+00 : f32
    %23 = vector.broadcast %cst_10 : f32 to vector<4x48xf32>
    %24 = arith.maximumf %20, %23 : vector<4x48xf32>
    %25 = tpu.concatenate %20, %24 in 1 : vector<4x48xf32>, vector<4x48xf32> -> vector<4x96xf32>
    %cst_11 = arith.constant dense<0.000000e+00> : vector<4x48xf32>
    %26 = tpu.matmul %25, %3, %cst_11 {dimension_numbers = #tpu.dot_dimension_numbers<[1], [0], [0], [1], [0, 0, 1, 1], [], []>} : vector<4x96xf32>, vector<96x48xf32>, vector<4x48xf32> -> vector<4x48xf32>
    %27 = vector.extract_strided_slice %6 {offsets = [8, 0], sizes = [4, 48], strides = [1, 1]} : vector<32x48xf32> to vector<4x48xf32>
    %28 = arith.addf %26, %27 : vector<4x48xf32>
    %29 = math.tanh %28 : vector<4x48xf32>
    %30 = vector.extract_strided_slice %29 {offsets = [0, 0], sizes = [4, 16], strides = [1, 1]} : vector<4x48xf32> to vector<4x16xf32>
    %c4 = arith.constant 4 : index
    %c0_12 = arith.constant 0 : index
    %31 = vector.load %arg2[%c4, %c0_12] : memref<32x16xf32, #tpu.memory_space<vmem>>, vector<4x16xf32>
    tpu.vector_store %arg2[%c4, %c0_12], %30 {strides = array<i32>} : memref<32x16xf32, #tpu.memory_space<vmem>>, vector<4x16xf32>,
    %cst_13 = arith.constant 0.000000e+00 : f32
    %32 = vector.broadcast %cst_13 : f32 to vector<4x48xf32>
    %33 = arith.maximumf %29, %32 : vector<4x48xf32>
    %34 = tpu.concatenate %29, %33 in 1 : vector<4x48xf32>, vector<4x48xf32> -> vector<4x96xf32>
    %cst_14 = arith.constant dense<0.000000e+00> : vector<4x48xf32>
    %35 = tpu.matmul %34, %3, %cst_14 {dimension_numbers = #tpu.dot_dimension_numbers<[1], [0], [0], [1], [0, 0, 1, 1], [], []>} : vector<4x96xf32>, vector<96x48xf32>, vector<4x48xf32> -> vector<4x48xf32>
    %36 = vector.extract_strided_slice %6 {offsets = [12, 0], sizes = [4, 48], strides = [1, 1]} : vector<32x48xf32> to vector<4x48xf32>
    %37 = arith.addf %35, %36 : vector<4x48xf32>
    %38 = math.tanh %37 : vector<4x48xf32>
    %39 = vector.extract_strided_slice %38 {offsets = [0, 0], sizes = [4, 16], strides = [1, 1]} : vector<4x48xf32> to vector<4x16xf32>
    %c8 = arith.constant 8 : index
    %c0_15 = arith.constant 0 : index
    %40 = vector.load %arg2[%c8, %c0_15] : memref<32x16xf32, #tpu.memory_space<vmem>>, vector<4x16xf32>
    tpu.vector_store %arg2[%c8, %c0_15], %39 {strides = array<i32>} : memref<32x16xf32, #tpu.memory_space<vmem>>, vector<4x16xf32>,
    %cst_16 = arith.constant 0.000000e+00 : f32
    %41 = vector.broadcast %cst_16 : f32 to vector<4x48xf32>
    %42 = arith.maximumf %38, %41 : vector<4x48xf32>
    %43 = tpu.concatenate %38, %42 in 1 : vector<4x48xf32>, vector<4x48xf32> -> vector<4x96xf32>
    %cst_17 = arith.constant dense<0.000000e+00> : vector<4x48xf32>
    %44 = tpu.matmul %43, %3, %cst_17 {dimension_numbers = #tpu.dot_dimension_numbers<[1], [0], [0], [1], [0, 0, 1, 1], [], []>} : vector<4x96xf32>, vector<96x48xf32>, vector<4x48xf32> -> vector<4x48xf32>
    %45 = vector.extract_strided_slice %6 {offsets = [16, 0], sizes = [4, 48], strides = [1, 1]} : vector<32x48xf32> to vector<4x48xf32>
    %46 = arith.addf %44, %45 : vector<4x48xf32>
    %47 = math.tanh %46 : vector<4x48xf32>
    %48 = vector.extract_strided_slice %47 {offsets = [0, 0], sizes = [4, 16], strides = [1, 1]} : vector<4x48xf32> to vector<4x16xf32>
    %c12 = arith.constant 12 : index
    %c0_18 = arith.constant 0 : index
    %49 = vector.load %arg2[%c12, %c0_18] : memref<32x16xf32, #tpu.memory_space<vmem>>, vector<4x16xf32>
    tpu.vector_store %arg2[%c12, %c0_18], %48 {strides = array<i32>} : memref<32x16xf32, #tpu.memory_space<vmem>>, vector<4x16xf32>,
    %cst_19 = arith.constant 0.000000e+00 : f32
    %50 = vector.broadcast %cst_19 : f32 to vector<4x48xf32>
    %51 = arith.maximumf %47, %50 : vector<4x48xf32>
    %52 = tpu.concatenate %47, %51 in 1 : vector<4x48xf32>, vector<4x48xf32> -> vector<4x96xf32>
    %cst_20 = arith.constant dense<0.000000e+00> : vector<4x48xf32>
    %53 = tpu.matmul %52, %3, %cst_20 {dimension_numbers = #tpu.dot_dimension_numbers<[1], [0], [0], [1], [0, 0, 1, 1], [], []>} : vector<4x96xf32>, vector<96x48xf32>, vector<4x48xf32> -> vector<4x48xf32>
    %54 = vector.extract_strided_slice %6 {offsets = [20, 0], sizes = [4, 48], strides = [1, 1]} : vector<32x48xf32> to vector<4x48xf32>
    %55 = arith.addf %53, %54 : vector<4x48xf32>
    %56 = math.tanh %55 : vector<4x48xf32>
    %57 = vector.extract_strided_slice %56 {offsets = [0, 0], sizes = [4, 16], strides = [1, 1]} : vector<4x48xf32> to vector<4x16xf32>
    %c16_21 = arith.constant 16 : index
    %c0_22 = arith.constant 0 : index
    %58 = vector.load %arg2[%c16_21, %c0_22] : memref<32x16xf32, #tpu.memory_space<vmem>>, vector<4x16xf32>
    tpu.vector_store %arg2[%c16_21, %c0_22], %57 {strides = array<i32>} : memref<32x16xf32, #tpu.memory_space<vmem>>, vector<4x16xf32>,
    %cst_23 = arith.constant 0.000000e+00 : f32
    %59 = vector.broadcast %cst_23 : f32 to vector<4x48xf32>
    %60 = arith.maximumf %56, %59 : vector<4x48xf32>
    %61 = tpu.concatenate %56, %60 in 1 : vector<4x48xf32>, vector<4x48xf32> -> vector<4x96xf32>
    %cst_24 = arith.constant dense<0.000000e+00> : vector<4x48xf32>
    %62 = tpu.matmul %61, %3, %cst_24 {dimension_numbers = #tpu.dot_dimension_numbers<[1], [0], [0], [1], [0, 0, 1, 1], [], []>} : vector<4x96xf32>, vector<96x48xf32>, vector<4x48xf32> -> vector<4x48xf32>
    %63 = vector.extract_strided_slice %6 {offsets = [24, 0], sizes = [4, 48], strides = [1, 1]} : vector<32x48xf32> to vector<4x48xf32>
    %64 = arith.addf %62, %63 : vector<4x48xf32>
    %65 = math.tanh %64 : vector<4x48xf32>
    %66 = vector.extract_strided_slice %65 {offsets = [0, 0], sizes = [4, 16], strides = [1, 1]} : vector<4x48xf32> to vector<4x16xf32>
    %c20 = arith.constant 20 : index
    %c0_25 = arith.constant 0 : index
    %67 = vector.load %arg2[%c20, %c0_25] : memref<32x16xf32, #tpu.memory_space<vmem>>, vector<4x16xf32>
    tpu.vector_store %arg2[%c20, %c0_25], %66 {strides = array<i32>} : memref<32x16xf32, #tpu.memory_space<vmem>>, vector<4x16xf32>,
    %cst_26 = arith.constant 0.000000e+00 : f32
    %68 = vector.broadcast %cst_26 : f32 to vector<4x48xf32>
    %69 = arith.maximumf %65, %68 : vector<4x48xf32>
    %70 = tpu.concatenate %65, %69 in 1 : vector<4x48xf32>, vector<4x48xf32> -> vector<4x96xf32>
    %cst_27 = arith.constant dense<0.000000e+00> : vector<4x48xf32>
    %71 = tpu.matmul %70, %3, %cst_27 {dimension_numbers = #tpu.dot_dimension_numbers<[1], [0], [0], [1], [0, 0, 1, 1], [], []>} : vector<4x96xf32>, vector<96x48xf32>, vector<4x48xf32> -> vector<4x48xf32>
    %72 = vector.extract_strided_slice %6 {offsets = [28, 0], sizes = [4, 48], strides = [1, 1]} : vector<32x48xf32> to vector<4x48xf32>
    %73 = arith.addf %71, %72 : vector<4x48xf32>
    %74 = math.tanh %73 : vector<4x48xf32>
    %75 = vector.extract_strided_slice %74 {offsets = [0, 0], sizes = [4, 16], strides = [1, 1]} : vector<4x48xf32> to vector<4x16xf32>
    %c24_28 = arith.constant 24 : index
    %c0_29 = arith.constant 0 : index
    %76 = vector.load %arg2[%c24_28, %c0_29] : memref<32x16xf32, #tpu.memory_space<vmem>>, vector<4x16xf32>
    tpu.vector_store %arg2[%c24_28, %c0_29], %75 {strides = array<i32>} : memref<32x16xf32, #tpu.memory_space<vmem>>, vector<4x16xf32>,
    %cst_30 = arith.constant 0.000000e+00 : f32
    %77 = vector.broadcast %cst_30 : f32 to vector<4x48xf32>
    %78 = arith.maximumf %74, %77 : vector<4x48xf32>
    %79 = tpu.concatenate %74, %78 in 1 : vector<4x48xf32>, vector<4x48xf32> -> vector<4x96xf32>
    %cst_31 = arith.constant dense<0.000000e+00> : vector<4x48xf32>
    %80 = tpu.matmul %79, %3, %cst_31 {dimension_numbers = #tpu.dot_dimension_numbers<[1], [0], [0], [1], [0, 0, 1, 1], [], []>} : vector<4x96xf32>, vector<96x48xf32>, vector<4x48xf32> -> vector<4x48xf32>
    %81 = vector.extract_strided_slice %6 {offsets = [0, 0], sizes = [4, 48], strides = [1, 1]} : vector<32x48xf32> to vector<4x48xf32>
    %82 = arith.addf %80, %81 : vector<4x48xf32>
    %83 = math.tanh %82 : vector<4x48xf32>
    %84 = vector.extract_strided_slice %83 {offsets = [0, 0], sizes = [4, 16], strides = [1, 1]} : vector<4x48xf32> to vector<4x16xf32>
    %c28 = arith.constant 28 : index
    %c0_32 = arith.constant 0 : index
    %85 = vector.load %arg2[%c28, %c0_32] : memref<32x16xf32, #tpu.memory_space<vmem>>, vector<4x16xf32>
    tpu.vector_store %arg2[%c28, %c0_32], %84 {strides = array<i32>} : memref<32x16xf32, #tpu.memory_space<vmem>>, vector<4x16xf32>,
    return
  }
}

</mosaic_0001>

<llo_original>
// kernel: rev1_forward.1
$region0: #{rev1_forward.1}
  #allocation0 [shape = 'u32[]', space=smem, size = 0x4, offset = 0x4, fixed_abs, tag = 'smem constant byte address 0x4 - core index']
  #allocation1 [shape = 'u32[144,128]{1,0:T(1,128)}', space=vmem, size = 0x12000, scoped, tag = 'internal scratch']
  %s0 = inlined_call_operand.vmem [shape: f32[32,16], index: 0, kind: input, shape index: {}]
  %s1 = inlined_call_operand.vmem [shape: f32[120,48], index: 1, kind: input, shape index: {}]
  %s2 = inlined_call_operand.vmem [shape: f32[32,16], index: 2, kind: output, shape index: {}]
  %s3 = sld [smem:[#allocation0]]
  $region18: #{rev1_forward.1} parent=0
    _
  %s5 = ssub.s32 1, %s3
  %s6 = scalar_select 0, %s5, %s3
  // Predicated region
  $region2: #{rev1_forward.1} parent=0 // pred_check
    _
  $region3: #{rev1_forward.1} parent=0 // pred_check_branch
    %8 = sbr.rel (0) target = $region5
  $region4: #{rev1_forward.1} parent=0 // pred_region
    _
  $region5: #{rev1_forward.1} parent=0 // pred_fallthru
    _
  // Predicated region
  $region6: #{rev1_forward.1} parent=0 // pred_check
    _
  $region7: #{rev1_forward.1} parent=0 // pred_check_branch
    %10 = sbr.rel (0) target = $region9
  $region8: #{rev1_forward.1} parent=0 // pred_region
    _
  $region9: #{rev1_forward.1} parent=0 // pred_fallthru
    _
  %v11 = vld [vmem:[%s0] sm:$0xff]
  %v12 = vld [vmem:[%s0 + $0x8] sm:$0xff]
  %v13 = vld [vmem:[%s0 + $0x10] sm:$0xff]
  %v14 = vld [vmem:[%s0 + $0x18] sm:$0xff]
  %v15 = vld [vmem:[%s1] sm:$0xff]
  %v16 = vld [vmem:[%s1 + $0x8] sm:$0xff]
  %v17 = vld [vmem:[%s1 + $0x10] sm:$0x1]
  %v18 = vld [vmem:[%s1 + $0x18] sm:$0xff]
  %v19 = vld [vmem:[%s1 + $0x20] sm:$0xff]
  %v20 = vld [vmem:[%s1 + $0x28] sm:$0xff]
  %v21 = vld [vmem:[%s1 + $0x30] sm:$0xff]
  %v22 = vld [vmem:[%s1 + $0x38] sm:$0xff]
  %v23 = vld [vmem:[%s1 + $0x40] sm:$0xff]
  %v24 = vld [vmem:[%s1 + $0x48] sm:$0xff]
  %v25 = vld [vmem:[%s1 + $0x50] sm:$0xff]
  %v26 = vld [vmem:[%s1 + $0x58] sm:$0xff]
  %v27 = vld [vmem:[%s1 + $0x60] sm:$0xff]
  %v28 = vld [vmem:[%s1 + $0x68] sm:$0xff]
  %v29 = vld [vmem:[%s1 + $0x70] sm:$0xff]
  %v30 = vlaneseq
  %v31 = vshrl.u32 %v30, 7
  %v32 = vsub.s32 0, %v31
  %v33 = vrot.slane %v17, %v32
  %vm34 = vcmask 130048
  %v36 = vsel %vm34, %v11, 0
  %v39 = vsel %vm34, %v12, 0
  %v42 = vsel %vm34, %v13, 0
  %v45 = vsel %vm34, %v14, 0
  %47 = vmatprep.subr.mxu0 0.0
  %48 = vmatpush1.msra.mxu0 0.0
  %49 = vmatprep.subr.mxu0 0.0
  %50 = vmatpush1.msra.mxu0 0.0
  %51 = vmatprep.subr.mxu0 0.0
  %52 = vmatpush1.msra.mxu0 0.0
  %53 = vmatprep.subr.mxu0 0.0
  %54 = vmatpush1.msra.mxu0 0.0
  %55 = vmatprep.subr.mxu0 0.0
  %56 = vmatpush1.msra.mxu0 0.0
  %57 = vmatprep.subr.mxu0 0.0
  %58 = vmatpush1.msra.mxu0 0.0
  %59 = vmatprep.subr.mxu0 0.0
  %60 = vmatpush1.msra.mxu0 0.0
  %61 = vmatprep.subr.mxu0 0.0
  %62 = vmatpush1.msra.mxu0 0.0
  %63 = vmatprep.subr.mxu0 0.0
  %64 = vmatpush1.msra.mxu0 0.0
  %65 = vmatprep.subr.mxu0 0.0
  %66 = vmatpush1.msra.mxu0 0.0
  %67 = vmatprep.subr.mxu0 0.0
  %68 = vmatpush1.msra.mxu0 0.0
  %69 = vmatprep.subr.mxu0 0.0
  %70 = vmatpush1.msra.mxu0 0.0
  %71 = vmatprep.subr.mxu0 0.0
  %72 = vmatpush1.msra.mxu0 0.0
  %73 = vmatprep.subr.mxu0 0.0
  %74 = vmatpush1.msra.mxu0 0.0
  %75 = vmatprep.subr.mxu0 0.0
  %76 = vmatpush1.msra.mxu0 %v16
  %77 = vmatprep.subr.mxu0 0.0
  %78 = vmatpush1.msra.mxu0 %v15
  %79 = vmatprep.subr.mxu0 0.0
  %80 = vmatpush2.msra.mxu0 0.0
  %81 = vmatprep.subr.mxu0 0.0
  %82 = vmatpush2.msra.mxu0 0.0
  %83 = vmatprep.subr.mxu0 0.0
  %84 = vmatpush2.msra.mxu0 0.0
  %85 = vmatprep.subr.mxu0 0.0
  %86 = vmatpush2.msra.mxu0 0.0
  %87 = vmatprep.subr.mxu0 0.0
  %88 = vmatpush2.msra.mxu0 0.0
  %89 = vmatprep.subr.mxu0 0.0
  %90 = vmatpush2.msra.mxu0 0.0
  %91 = vmatprep.subr.mxu0 0.0
  %92 = vmatpush2.msra.mxu0 0.0
  %93 = vmatprep.subr.mxu0 0.0
  %94 = vmatpush2.msra.mxu0 0.0
  %95 = vmatprep.subr.mxu0 0.0
  %96 = vmatpush2.msra.mxu0 0.0
  %97 = vmatprep.subr.mxu0 0.0
  %98 = vmatpush2.msra.mxu0 0.0
  %99 = vmatprep.subr.mxu0 0.0
  %100 = vmatpush2.msra.mxu0 0.0
  %101 = vmatprep.subr.mxu0 0.0
  %102 = vmatpush2.msra.mxu0 0.0
  %103 = vmatprep.subr.mxu0 0.0
  %104 = vmatpush2.msra.mxu0 0.0
  %105 = vmatprep.subr.mxu0 0.0
  %106 = vmatpush2.msra.mxu0 0.0
  %107 = vmatprep.subr.mxu0 0.0
  %108 = vmatpush2.msra.mxu0 0.0
  %109 = vmatprep.subr.mxu0 0.0
  %110 = vmatpush2.msra.mxu0 0.0
  %111 = vmatprep.mubr.f32.mxu0 0.0
  %112 = vmatmul.mubr.f32.gmra.mxu0 %v36
  %v113 = vpop.f32.mrf.mxu0
  %v114 = vadd.f32 %v33, %v113
  %v115 = vpop.f32.mrf.mxu0
  %116 = vmatprep.mubr.f32.mxu0 0.0
  %117 = vmatmul.mubr.f32.gmra.mxu0 %v39
  %v118 = vpop.f32.mrf.mxu0
  %v119 = vadd.f32 %v33, %v118
  %v120 = vpop.f32.mrf.mxu0
  %121 = vmatprep.mubr.f32.mxu0 0.0
  %122 = vmatmul.mubr.f32.gmra.mxu0 %v42
  %v123 = vpop.f32.mrf.mxu0
  %v124 = vadd.f32 %v33, %v123
  %v125 = vpop.f32.mrf.mxu0
  %126 = vmatprep.mubr.f32.mxu0 0.0
  %127 = vmatmul.mubr.f32.gmra.mxu0 %v45
  %v128 = vpop.f32.mrf.mxu0
  %v129 = vadd.f32 %v33, %v128
  %v130 = vpop.f32.mrf.mxu0
  %131 = vdwg.mxu0
  %v132 = vlaneseq
  %v133 = vand.u32 %v132, 127
  %vm134 = vcmp.lt.s32.totalorder %v133, 16
  %v135 = vtanh.pop %v114
  %v136 = vsel %vm134, 0.0, %v135
  %v137 = vmax.f32 %v136, 0.0
  %139 = vrot.lane.b32.xlu0 %v137, 48
  %v140 = vpop.permute.xlu0 %139
  %vm142 = vcmask 392192
  %v143 = vsel %vm142, %v136, %v140
  %v145 = vrot.slane %v114, 4
  %vm147 = vcmask 785408
  %v149 = vsel %vm147, %v143, 0
  %151 = vmatprep.subr.mxu0 0.0
  %152 = vmatpush1.msra.mxu0 0.0
  %153 = vmatprep.subr.mxu0 0.0
  %154 = vmatpush1.msra.mxu0 0.0
  %155 = vmatprep.subr.mxu0 0.0
  %156 = vmatpush1.msra.mxu0 0.0
  %157 = vmatprep.subr.mxu0 0.0
  %158 = vmatpush1.msra.mxu0 0.0
  %159 = vmatprep.subr.mxu0 0.0
  %160 = vmatpush1.msra.mxu0 %v29
  %161 = vmatprep.subr.mxu0 0.0
  %162 = vmatpush1.msra.mxu0 %v28
  %163 = vmatprep.subr.mxu0 0.0
  %164 = vmatpush1.msra.mxu0 %v27
  %165 = vmatprep.subr.mxu0 0.0
  %166 = vmatpush1.msra.mxu0 %v26
  %167 = vmatprep.subr.mxu0 0.0
  %168 = vmatpush1.msra.mxu0 %v25
  %169 = vmatprep.subr.mxu0 0.0
  %170 = vmatpush1.msra.mxu0 %v24
  %171 = vmatprep.subr.mxu0 0.0
  %172 = vmatpush1.msra.mxu0 %v23
  %173 = vmatprep.subr.mxu0 0.0
  %174 = vmatpush1.msra.mxu0 %v22
  %175 = vmatprep.subr.mxu0 0.0
  %176 = vmatpush1.msra.mxu0 %v21
  %177 = vmatprep.subr.mxu0 0.0
  %178 = vmatpush1.msra.mxu0 %v20
  %179 = vmatprep.subr.mxu0 0.0
  %180 = vmatpush1.msra.mxu0 %v19
  %181 = vmatprep.subr.mxu0 0.0
  %182 = vmatpush1.msra.mxu0 %v18
  %183 = vmatprep.subr.mxu0 0.0
  %184 = vmatpush2.msra.mxu0 0.0
  %185 = vmatprep.subr.mxu0 0.0
  %186 = vmatpush2.msra.mxu0 0.0
  %187 = vmatprep.subr.mxu0 0.0
  %188 = vmatpush2.msra.mxu0 0.0
  %189 = vmatprep.subr.mxu0 0.0
  %190 = vmatpush2.msra.mxu0 0.0
  %191 = vmatprep.subr.mxu0 0.0
  %192 = vmatpush2.msra.mxu0 0.0
  %193 = vmatprep.subr.mxu0 0.0
  %194 = vmatpush2.msra.mxu0 0.0
  %195 = vmatprep.subr.mxu0 0.0
  %196 = vmatpush2.msra.mxu0 0.0
  %197 = vmatprep.subr.mxu0 0.0
  %198 = vmatpush2.msra.mxu0 0.0
  %199 = vmatprep.subr.mxu0 0.0
  %200 = vmatpush2.msra.mxu0 0.0
  %201 = vmatprep.subr.mxu0 0.0
  %202 = vmatpush2.msra.mxu0 0.0
  %203 = vmatprep.subr.mxu0 0.0
  %204 = vmatpush2.msra.mxu0 0.0
  %205 = vmatprep.subr.mxu0 0.0
  %206 = vmatpush2.msra.mxu0 0.0
  %207 = vmatprep.subr.mxu0 0.0
  %208 = vmatpush2.msra.mxu0 0.0
  %209 = vmatprep.subr.mxu0 0.0
  %210 = vmatpush2.msra.mxu0 0.0
  %211 = vmatprep.subr.mxu0 0.0
  %212 = vmatpush2.msra.mxu0 0.0
  %213 = vmatprep.subr.mxu0 0.0
  %214 = vmatpush2.msra.mxu0 0.0
  %215 = vmatprep.mubr.f32.mxu0 0.0
  %216 = vmatmul.mubr.f32.gmra.mxu0 %v149
  %v217 = vpop.f32.mrf.mxu0
  %v218 = vadd.f32 %v145, %v217
  %v219 = vpop.f32.mrf.mxu0
  %220 = vdwg.mxu0
  %v221 = vtanh.pop %v218
  %vm222 = vcmask 125952
  %223 = vst.msk [vmem:[%s2] sm:$0xf] %vm222, %v221
  %v224 = vmax.f32 %v221, 0.0
  %226 = vrot.lane.b32.xlu0 %v224, 48
  %v227 = vpop.permute.xlu0 %226
  %v229 = vsel %vm142, %v221, %v227
  %v231 = vsel %vm147, %v229, 0
  %233 = vmatprep.subr.mxu0 0.0
  %234 = vmatpush1.msra.mxu0 0.0
  %235 = vmatprep.subr.mxu0 0.0
  %236 = vmatpush1.msra.mxu0 0.0
  %237 = vmatprep.subr.mxu0 0.0
  %238 = vmatpush1.msra.mxu0 0.0
  %239 = vmatprep.subr.mxu0 0.0
  %240 = vmatpush1.msra.mxu0 0.0
  %241 = vmatprep.subr.mxu0 0.0
  %242 = vmatpush1.msra.mxu0 %v29
  %243 = vmatprep.subr.mxu0 0.0
  %244 = vmatpush1.msra.mxu0 %v28
  %245 = vmatprep.subr.mxu0 0.0
  %246 = vmatpush1.msra.mxu0 %v27
  %247 = vmatprep.subr.mxu0 0.0
  %248 = vmatpush1.msra.mxu0 %v26
  %249 = vmatprep.subr.mxu0 0.0
  %250 = vmatpush1.msra.mxu0 %v25
  %251 = vmatprep.subr.mxu0 0.0
  %252 = vmatpush1.msra.mxu0 %v24
  %253 = vmatprep.subr.mxu0 0.0
  %254 = vmatpush1.msra.mxu0 %v23
  %255 = vmatprep.subr.mxu0 0.0
  %256 = vmatpush1.msra.mxu0 %v22
  %257 = vmatprep.subr.mxu0 0.0
  %258 = vmatpush1.msra.mxu0 %v21
  %259 = vmatprep.subr.mxu0 0.0
  %260 = vmatpush1.msra.mxu0 %v20
  %261 = vmatprep.subr.mxu0 0.0
  %262 = vmatpush1.msra.mxu0 %v19
  %263 = vmatprep.subr.mxu0 0.0
  %264 = vmatpush1.msra.mxu0 %v18
  %265 = vmatprep.subr.mxu0 0.0
  %266 = vmatpush2.msra.mxu0 0.0
  %267 = vmatprep.subr.mxu0 0.0
  %268 = vmatpush2.msra.mxu0 0.0
  %269 = vmatprep.subr.mxu0 0.0
  %270 = vmatpush2.msra.mxu0 0.0
  %271 = vmatprep.subr.mxu0 0.0
  %272 = vmatpush2.msra.mxu0 0.0
  %273 = vmatprep.subr.mxu0 0.0
  %274 = vmatpush2.msra.mxu0 0.0
  %275 = vmatprep.subr.mxu0 0.0
  %276 = vmatpush2.msra.mxu0 0.0
  %277 = vmatprep.subr.mxu0 0.0
  %278 = vmatpush2.msra.mxu0 0.0
  %279 = vmatprep.subr.mxu0 0.0
  %280 = vmatpush2.msra.mxu0 0.0
  %281 = vmatprep.subr.mxu0 0.0
  %282 = vmatpush2.msra.mxu0 0.0
  %283 = vmatprep.subr.mxu0 0.0
  %284 = vmatpush2.msra.mxu0 0.0
  %285 = vmatprep.subr.mxu0 0.0
  %286 = vmatpush2.msra.mxu0 0.0
  %287 = vmatprep.subr.mxu0 0.0
  %288 = vmatpush2.msra.mxu0 0.0
  %289 = vmatprep.subr.mxu0 0.0
  %290 = vmatpush2.msra.mxu0 0.0
  %291 = vmatprep.subr.mxu0 0.0
  %292 = vmatpush2.msra.mxu0 0.0
  %293 = vmatprep.subr.mxu0 0.0
  %294 = vmatpush2.msra.mxu0 0.0
  %295 = vmatprep.subr.mxu0 0.0
  %296 = vmatpush2.msra.mxu0 0.0
  %297 = vmatprep.mubr.f32.mxu0 0.0
  %298 = vmatmul.mubr.f32.gmra.mxu0 %v231
  %v299 = vpop.f32.mrf.mxu0
  %v300 = vadd.f32 %v119, %v299
  %v301 = vpop.f32.mrf.mxu0
  %302 = vdwg.mxu0
  %v303 = vtanh.pop %v300
  %304 = vst.msk [vmem:[%s2 + $0x4] sm:$0xf] %vm222, %v303
  %v305 = vmax.f32 %v303, 0.0
  %307 = vrot.lane.b32.xlu0 %v305, 48
  %v308 = vpop.permute.xlu0 %307
  %v310 = vsel %vm142, %v303, %v308
  %v312 = vrot.slane %v119, 4
  %v315 = vsel %vm147, %v310, 0
  %317 = vmatprep.subr.mxu0 0.0
  %318 = vmatpush1.msra.mxu0 0.0
  %319 = vmatprep.subr.mxu0 0.0
  %320 = vmatpush1.msra.mxu0 0.0
  %321 = vmatprep.subr.mxu0 0.0
  %322 = vmatpush1.msra.mxu0 0.0
  %323 = vmatprep.subr.mxu0 0.0
  %324 = vmatpush1.msra.mxu0 0.0
  %325 = vmatprep.subr.mxu0 0.0
  %326 = vmatpush1.msra.mxu0 %v29
  %327 = vmatprep.subr.mxu0 0.0
  %328 = vmatpush1.msra.mxu0 %v28
  %329 = vmatprep.subr.mxu0 0.0
  %330 = vmatpush1.msra.mxu0 %v27
  %331 = vmatprep.subr.mxu0 0.0
  %332 = vmatpush1.msra.mxu0 %v26
  %333 = vmatprep.subr.mxu0 0.0
  %334 = vmatpush1.msra.mxu0 %v25
  %335 = vmatprep.subr.mxu0 0.0
  %336 = vmatpush1.msra.mxu0 %v24
  %337 = vmatprep.subr.mxu0 0.0
  %338 = vmatpush1.msra.mxu0 %v23
  %339 = vmatprep.subr.mxu0 0.0
  %340 = vmatpush1.msra.mxu0 %v22
  %341 = vmatprep.subr.mxu0 0.0
  %342 = vmatpush1.msra.mxu0 %v21
  %343 = vmatprep.subr.mxu0 0.0
  %344 = vmatpush1.msra.mxu0 %v20
  %345 = vmatprep.subr.mxu0 0.0
  %346 = vmatpush1.msra.mxu0 %v19
  %347 = vmatprep.subr.mxu0 0.0
  %348 = vmatpush1.msra.mxu0 %v18
  %349 = vmatprep.subr.mxu0 0.0
  %350 = vmatpush2.msra.mxu0 0.0
  %351 = vmatprep.subr.mxu0 0.0
  %352 = vmatpush2.msra.mxu0 0.0
  %353 = vmatprep.subr.mxu0 0.0
  %354 = vmatpush2.msra.mxu0 0.0
  %355 = vmatprep.subr.mxu0 0.0
  %356 = vmatpush2.msra.mxu0 0.0
  %357 = vmatprep.subr.mxu0 0.0
  %358 = vmatpush2.msra.mxu0 0.0
  %359 = vmatprep.subr.mxu0 0.0
  %360 = vmatpush2.msra.mxu0 0.0
  %361 = vmatprep.subr.mxu0 0.0
  %362 = vmatpush2.msra.mxu0 0.0
  %363 = vmatprep.subr.mxu0 0.0
  %364 = vmatpush2.msra.mxu0 0.0
  %365 = vmatprep.subr.mxu0 0.0
  %366 = vmatpush2.msra.mxu0 0.0
  %367 = vmatprep.subr.mxu0 0.0
  %368 = vmatpush2.msra.mxu0 0.0
  %369 = vmatprep.subr.mxu0 0.0
  %370 = vmatpush2.msra.mxu0 0.0
  %371 = vmatprep.subr.mxu0 0.0
  %372 = vmatpush2.msra.mxu0 0.0
  %373 = vmatprep.subr.mxu0 0.0
  %374 = vmatpush2.msra.mxu0 0.0
  %375 = vmatprep.subr.mxu0 0.0
  %376 = vmatpush2.msra.mxu0 0.0
  %377 = vmatprep.subr.mxu0 0.0
  %378 = vmatpush2.msra.mxu0 0.0
  %379 = vmatprep.subr.mxu0 0.0
  %380 = vmatpush2.msra.mxu0 0.0
  %381 = vmatprep.mubr.f32.mxu0 0.0
  %382 = vmatmul.mubr.f32.gmra.mxu0 %v315
  %v383 = vpop.f32.mrf.mxu0
  %v384 = vadd.f32 %v312, %v383
  %v385 = vpop.f32.mrf.mxu0
  %386 = vdwg.mxu0
  %v387 = vtanh.pop %v384
  %388 = vst.msk [vmem:[%s2 + $0x8] sm:$0xf] %vm222, %v387
  %v389 = vmax.f32 %v387, 0.0
  %391 = vrot.lane.b32.xlu0 %v389, 48
  %v392 = vpop.permute.xlu0 %391
  %v394 = vsel %vm142, %v387, %v392
  %v396 = vsel %vm147, %v394, 0
  %398 = vmatprep.subr.mxu0 0.0
  %399 = vmatpush1.msra.mxu0 0.0
  %400 = vmatprep.subr.mxu0 0.0
  %401 = vmatpush1.msra.mxu0 0.0
  %402 = vmatprep.subr.mxu0 0.0
  %403 = vmatpush1.msra.mxu0 0.0
  %404 = vmatprep.subr.mxu0 0.0
  %405 = vmatpush1.msra.mxu0 0.0
  %406 = vmatprep.subr.mxu0 0.0
  %407 = vmatpush1.msra.mxu0 %v29
  %408 = vmatprep.subr.mxu0 0.0
  %409 = vmatpush1.msra.mxu0 %v28
  %410 = vmatprep.subr.mxu0 0.0
  %411 = vmatpush1.msra.mxu0 %v27
  %412 = vmatprep.subr.mxu0 0.0
  %413 = vmatpush1.msra.mxu0 %v26
  %414 = vmatprep.subr.mxu0 0.0
  %415 = vmatpush1.msra.mxu0 %v25
  %416 = vmatprep.subr.mxu0 0.0
  %417 = vmatpush1.msra.mxu0 %v24
  %418 = vmatprep.subr.mxu0 0.0
  %419 = vmatpush1.msra.mxu0 %v23
  %420 = vmatprep.subr.mxu0 0.0
  %421 = vmatpush1.msra.mxu0 %v22
  %422 = vmatprep.subr.mxu0 0.0
  %423 = vmatpush1.msra.mxu0 %v21
  %424 = vmatprep.subr.mxu0 0.0
  %425 = vmatpush1.msra.mxu0 %v20
  %426 = vmatprep.subr.mxu0 0.0
  %427 = vmatpush1.msra.mxu0 %v19
  %428 = vmatprep.subr.mxu0 0.0
  %429 = vmatpush1.msra.mxu0 %v18
  %430 = vmatprep.subr.mxu0 0.0
  %431 = vmatpush2.msra.mxu0 0.0
  %432 = vmatprep.subr.mxu0 0.0
  %433 = vmatpush2.msra.mxu0 0.0
  %434 = vmatprep.subr.mxu0 0.0
  %435 = vmatpush2.msra.mxu0 0.0
  %436 = vmatprep.subr.mxu0 0.0
  %437 = vmatpush2.msra.mxu0 0.0
  %438 = vmatprep.subr.mxu0 0.0
  %439 = vmatpush2.msra.mxu0 0.0
  %440 = vmatprep.subr.mxu0 0.0
  %441 = vmatpush2.msra.mxu0 0.0
  %442 = vmatprep.subr.mxu0 0.0
  %443 = vmatpush2.msra.mxu0 0.0
  %444 = vmatprep.subr.mxu0 0.0
  %445 = vmatpush2.msra.mxu0 0.0
  %446 = vmatprep.subr.mxu0 0.0
  %447 = vmatpush2.msra.mxu0 0.0
  %448 = vmatprep.subr.mxu0 0.0
  %449 = vmatpush2.msra.mxu0 0.0
  %450 = vmatprep.subr.mxu0 0.0
  %451 = vmatpush2.msra.mxu0 0.0
  %452 = vmatprep.subr.mxu0 0.0
  %453 = vmatpush2.msra.mxu0 0.0
  %454 = vmatprep.subr.mxu0 0.0
  %455 = vmatpush2.msra.mxu0 0.0
  %456 = vmatprep.subr.mxu0 0.0
  %457 = vmatpush2.msra.mxu0 0.0
  %458 = vmatprep.subr.mxu0 0.0
  %459 = vmatpush2.msra.mxu0 0.0
  %460 = vmatprep.subr.mxu0 0.0
  %461 = vmatpush2.msra.mxu0 0.0
  %462 = vmatprep.mubr.f32.mxu0 0.0
  %463 = vmatmul.mubr.f32.gmra.mxu0 %v396
  %v464 = vpop.f32.mrf.mxu0
  %v465 = vadd.f32 %v124, %v464
  %v466 = vpop.f32.mrf.mxu0
  %467 = vdwg.mxu0
  %v468 = vtanh.pop %v465
  %469 = vst.msk [vmem:[%s2 + $0xc] sm:$0xf] %vm222, %v468
  %v470 = vmax.f32 %v468, 0.0
  %472 = vrot.lane.b32.xlu0 %v470, 48
  %v473 = vpop.permute.xlu0 %472
  %v475 = vsel %vm142, %v468, %v473
  %v477 = vrot.slane %v124, 4
  %v480 = vsel %vm147, %v475, 0
  %482 = vmatprep.subr.mxu0 0.0
  %483 = vmatpush1.msra.mxu0 0.0
  %484 = vmatprep.subr.mxu0 0.0
  %485 = vmatpush1.msra.mxu0 0.0
  %486 = vmatprep.subr.mxu0 0.0
  %487 = vmatpush1.msra.mxu0 0.0
  %488 = vmatprep.subr.mxu0 0.0
  %489 = vmatpush1.msra.mxu0 0.0
  %490 = vmatprep.subr.mxu0 0.0
  %491 = vmatpush1.msra.mxu0 %v29
  %492 = vmatprep.subr.mxu0 0.0
  %493 = vmatpush1.msra.mxu0 %v28
  %494 = vmatprep.subr.mxu0 0.0
  %495 = vmatpush1.msra.mxu0 %v27
  %496 = vmatprep.subr.mxu0 0.0
  %497 = vmatpush1.msra.mxu0 %v26
  %498 = vmatprep.subr.mxu0 0.0
  %499 = vmatpush1.msra.mxu0 %v25
  %500 = vmatprep.subr.mxu0 0.0
  %501 = vmatpush1.msra.mxu0 %v24
  %502 = vmatprep.subr.mxu0 0.0
  %503 = vmatpush1.msra.mxu0 %v23
  %504 = vmatprep.subr.mxu0 0.0
  %505 = vmatpush1.msra.mxu0 %v22
  %506 = vmatprep.subr.mxu0 0.0
  %507 = vmatpush1.msra.mxu0 %v21
  %508 = vmatprep.subr.mxu0 0.0
  %509 = vmatpush1.msra.mxu0 %v20
  %510 = vmatprep.subr.mxu0 0.0
  %511 = vmatpush1.msra.mxu0 %v19
  %512 = vmatprep.subr.mxu0 0.0
  %513 = vmatpush1.msra.mxu0 %v18
  %514 = vmatprep.subr.mxu0 0.0
  %515 = vmatpush2.msra.mxu0 0.0
  %516 = vmatprep.subr.mxu0 0.0
  %517 = vmatpush2.msra.mxu0 0.0
  %518 = vmatprep.subr.mxu0 0.0
  %519 = vmatpush2.msra.mxu0 0.0
  %520 = vmatprep.subr.mxu0 0.0
  %521 = vmatpush2.msra.mxu0 0.0
  %522 = vmatprep.subr.mxu0 0.0
  %523 = vmatpush2.msra.mxu0 0.0
  %524 = vmatprep.subr.mxu0 0.0
  %525 = vmatpush2.msra.mxu0 0.0
  %526 = vmatprep.subr.mxu0 0.0
  %527 = vmatpush2.msra.mxu0 0.0
  %528 = vmatprep.subr.mxu0 0.0
  %529 = vmatpush2.msra.mxu0 0.0
  %530 = vmatprep.subr.mxu0 0.0
  %531 = vmatpush2.msra.mxu0 0.0
  %532 = vmatprep.subr.mxu0 0.0
  %533 = vmatpush2.msra.mxu0 0.0
  %534 = vmatprep.subr.mxu0 0.0
  %535 = vmatpush2.msra.mxu0 0.0
  %536 = vmatprep.subr.mxu0 0.0
  %537 = vmatpush2.msra.mxu0 0.0
  %538 = vmatprep.subr.mxu0 0.0
  %539 = vmatpush2.msra.mxu0 0.0
  %540 = vmatprep.subr.mxu0 0.0
  %541 = vmatpush2.msra.mxu0 0.0
  %542 = vmatprep.subr.mxu0 0.0
  %543 = vmatpush2.msra.mxu0 0.0
  %544 = vmatprep.subr.mxu0 0.0
  %545 = vmatpush2.msra.mxu0 0.0
  %546 = vmatprep.mubr.f32.mxu0 0.0
  %547 = vmatmul.mubr.f32.gmra.mxu0 %v480
  %v548 = vpop.f32.mrf.mxu0
  %v549 = vadd.f32 %v477, %v548
  %v550 = vpop.f32.mrf.mxu0
  %551 = vdwg.mxu0
  %v552 = vtanh.pop %v549
  %553 = vst.msk [vmem:[%s2 + $0x10] sm:$0xf] %vm222, %v552
  %v554 = vmax.f32 %v552, 0.0
  %556 = vrot.lane.b32.xlu0 %v554, 48
  %v557 = vpop.permute.xlu0 %556
  %v559 = vsel %vm142, %v552, %v557
  %v561 = vsel %vm147, %v559, 0
  %563 = vmatprep.subr.mxu0 0.0
  %564 = vmatpush1.msra.mxu0 0.0
  %565 = vmatprep.subr.mxu0 0.0
  %566 = vmatpush1.msra.mxu0 0.0
  %567 = vmatprep.subr.mxu0 0.0
  %568 = vmatpush1.msra.mxu0 0.0
  %569 = vmatprep.subr.mxu0 0.0
  %570 = vmatpush1.msra.mxu0 0.0
  %571 = vmatprep.subr.mxu0 0.0
  %572 = vmatpush1.msra.mxu0 %v29
  %573 = vmatprep.subr.mxu0 0.0
  %574 = vmatpush1.msra.mxu0 %v28
  %575 = vmatprep.subr.mxu0 0.0
  %576 = vmatpush1.msra.mxu0 %v27
  %577 = vmatprep.subr.mxu0 0.0
  %578 = vmatpush1.msra.mxu0 %v26
  %579 = vmatprep.subr.mxu0 0.0
  %580 = vmatpush1.msra.mxu0 %v25
  %581 = vmatprep.subr.mxu0 0.0
  %582 = vmatpush1.msra.mxu0 %v24
  %583 = vmatprep.subr.mxu0 0.0
  %584 = vmatpush1.msra.mxu0 %v23
  %585 = vmatprep.subr.mxu0 0.0
  %586 = vmatpush1.msra.mxu0 %v22
  %587 = vmatprep.subr.mxu0 0.0
  %588 = vmatpush1.msra.mxu0 %v21
  %589 = vmatprep.subr.mxu0 0.0
  %590 = vmatpush1.msra.mxu0 %v20
  %591 = vmatprep.subr.mxu0 0.0
  %592 = vmatpush1.msra.mxu0 %v19
  %593 = vmatprep.subr.mxu0 0.0
  %594 = vmatpush1.msra.mxu0 %v18
  %595 = vmatprep.subr.mxu0 0.0
  %596 = vmatpush2.msra.mxu0 0.0
  %597 = vmatprep.subr.mxu0 0.0
  %598 = vmatpush2.msra.mxu0 0.0
  %599 = vmatprep.subr.mxu0 0.0
  %600 = vmatpush2.msra.mxu0 0.0
  %601 = vmatprep.subr.mxu0 0.0
  %602 = vmatpush2.msra.mxu0 0.0
  %603 = vmatprep.subr.mxu0 0.0
  %604 = vmatpush2.msra.mxu0 0.0
  %605 = vmatprep.subr.mxu0 0.0
  %606 = vmatpush2.msra.mxu0 0.0
  %607 = vmatprep.subr.mxu0 0.0
  %608 = vmatpush2.msra.mxu0 0.0
  %609 = vmatprep.subr.mxu0 0.0
  %610 = vmatpush2.msra.mxu0 0.0
  %611 = vmatprep.subr.mxu0 0.0
  %612 = vmatpush2.msra.mxu0 0.0
  %613 = vmatprep.subr.mxu0 0.0
  %614 = vmatpush2.msra.mxu0 0.0
  %615 = vmatprep.subr.mxu0 0.0
  %616 = vmatpush2.msra.mxu0 0.0
  %617 = vmatprep.subr.mxu0 0.0
  %618 = vmatpush2.msra.mxu0 0.0
  %619 = vmatprep.subr.mxu0 0.0
  %620 = vmatpush2.msra.mxu0 0.0
  %621 = vmatprep.subr.mxu0 0.0
  %622 = vmatpush2.msra.mxu0 0.0
  %623 = vmatprep.subr.mxu0 0.0
  %624 = vmatpush2.msra.mxu0 0.0
  %625 = vmatprep.subr.mxu0 0.0
  %626 = vmatpush2.msra.mxu0 0.0
  %627 = vmatprep.mubr.f32.mxu0 0.0
  %628 = vmatmul.mubr.f32.gmra.mxu0 %v561
  %v629 = vpop.f32.mrf.mxu0
  %v630 = vadd.f32 %v129, %v629
  %v631 = vpop.f32.mrf.mxu0
  %632 = vdwg.mxu0
  %v633 = vtanh.pop %v630
  %634 = vst.msk [vmem:[%s2 + $0x14] sm:$0xf] %vm222, %v633
  %v635 = vmax.f32 %v633, 0.0
  %637 = vrot.lane.b32.xlu0 %v635, 48
  %v638 = vpop.permute.xlu0 %637
  %v640 = vsel %vm142, %v633, %v638
  %v642 = vrot.slane %v129, 4
  %v645 = vsel %vm147, %v640, 0
  %647 = vmatprep.subr.mxu0 0.0
  %648 = vmatpush1.msra.mxu0 0.0
  %649 = vmatprep.subr.mxu0 0.0
  %650 = vmatpush1.msra.mxu0 0.0
  %651 = vmatprep.subr.mxu0 0.0
  %652 = vmatpush1.msra.mxu0 0.0
  %653 = vmatprep.subr.mxu0 0.0
  %654 = vmatpush1.msra.mxu0 0.0
  %655 = vmatprep.subr.mxu0 0.0
  %656 = vmatpush1.msra.mxu0 %v29
  %657 = vmatprep.subr.mxu0 0.0
  %658 = vmatpush1.msra.mxu0 %v28
  %659 = vmatprep.subr.mxu0 0.0
  %660 = vmatpush1.msra.mxu0 %v27
  %661 = vmatprep.subr.mxu0 0.0
  %662 = vmatpush1.msra.mxu0 %v26
  %663 = vmatprep.subr.mxu0 0.0
  %664 = vmatpush1.msra.mxu0 %v25
  %665 = vmatprep.subr.mxu0 0.0
  %666 = vmatpush1.msra.mxu0 %v24
  %667 = vmatprep.subr.mxu0 0.0
  %668 = vmatpush1.msra.mxu0 %v23
  %669 = vmatprep.subr.mxu0 0.0
  %670 = vmatpush1.msra.mxu0 %v22
  %671 = vmatprep.subr.mxu0 0.0
  %672 = vmatpush1.msra.mxu0 %v21
  %673 = vmatprep.subr.mxu0 0.0
  %674 = vmatpush1.msra.mxu0 %v20
  %675 = vmatprep.subr.mxu0 0.0
  %676 = vmatpush1.msra.mxu0 %v19
  %677 = vmatprep.subr.mxu0 0.0
  %678 = vmatpush1.msra.mxu0 %v18
  %679 = vmatprep.subr.mxu0 0.0
  %680 = vmatpush2.msra.mxu0 0.0
  %681 = vmatprep.subr.mxu0 0.0
  %682 = vmatpush2.msra.mxu0 0.0
  %683 = vmatprep.subr.mxu0 0.0
  %684 = vmatpush2.msra.mxu0 0.0
  %685 = vmatprep.subr.mxu0 0.0
  %686 = vmatpush2.msra.mxu0 0.0
  %687 = vmatprep.subr.mxu0 0.0
  %688 = vmatpush2.msra.mxu0 0.0
  %689 = vmatprep.subr.mxu0 0.0
  %690 = vmatpush2.msra.mxu0 0.0
  %691 = vmatprep.subr.mxu0 0.0
  %692 = vmatpush2.msra.mxu0 0.0
  %693 = vmatprep.subr.mxu0 0.0
  %694 = vmatpush2.msra.mxu0 0.0
  %695 = vmatprep.subr.mxu0 0.0
  %696 = vmatpush2.msra.mxu0 0.0
  %697 = vmatprep.subr.mxu0 0.0
  %698 = vmatpush2.msra.mxu0 0.0
  %699 = vmatprep.subr.mxu0 0.0
  %700 = vmatpush2.msra.mxu0 0.0
  %701 = vmatprep.subr.mxu0 0.0
  %702 = vmatpush2.msra.mxu0 0.0
  %703 = vmatprep.subr.mxu0 0.0
  %704 = vmatpush2.msra.mxu0 0.0
  %705 = vmatprep.subr.mxu0 0.0
  %706 = vmatpush2.msra.mxu0 0.0
  %707 = vmatprep.subr.mxu0 0.0
  %708 = vmatpush2.msra.mxu0 0.0
  %709 = vmatprep.subr.mxu0 0.0
  %710 = vmatpush2.msra.mxu0 0.0
  %711 = vmatprep.mubr.f32.mxu0 0.0
  %712 = vmatmul.mubr.f32.gmra.mxu0 %v645
  %v713 = vpop.f32.mrf.mxu0
  %v714 = vadd.f32 %v642, %v713
  %v715 = vpop.f32.mrf.mxu0
  %716 = vdwg.mxu0
  %v717 = vtanh.pop %v714
  %718 = vst.msk [vmem:[%s2 + $0x18] sm:$0xf] %vm222, %v717
  %v719 = vmax.f32 %v717, 0.0
  %721 = vrot.lane.b32.xlu0 %v719, 48
  %v722 = vpop.permute.xlu0 %721
  %v724 = vsel %vm142, %v717, %v722
  %v726 = vsel %vm147, %v724, 0
  %728 = vmatprep.subr.mxu0 0.0
  %729 = vmatpush1.msra.mxu0 0.0
  %730 = vmatprep.subr.mxu0 0.0
  %731 = vmatpush1.msra.mxu0 0.0
  %732 = vmatprep.subr.mxu0 0.0
  %733 = vmatpush1.msra.mxu0 0.0
  %734 = vmatprep.subr.mxu0 0.0
  %735 = vmatpush1.msra.mxu0 0.0
  %736 = vmatprep.subr.mxu0 0.0
  %737 = vmatpush1.msra.mxu0 %v29
  %738 = vmatprep.subr.mxu0 0.0
  %739 = vmatpush1.msra.mxu0 %v28
  %740 = vmatprep.subr.mxu0 0.0
  %741 = vmatpush1.msra.mxu0 %v27
  %742 = vmatprep.subr.mxu0 0.0
  %743 = vmatpush1.msra.mxu0 %v26
  %744 = vmatprep.subr.mxu0 0.0
  %745 = vmatpush1.msra.mxu0 %v25
  %746 = vmatprep.subr.mxu0 0.0
  %747 = vmatpush1.msra.mxu0 %v24
  %748 = vmatprep.subr.mxu0 0.0
  %749 = vmatpush1.msra.mxu0 %v23
  %750 = vmatprep.subr.mxu0 0.0
  %751 = vmatpush1.msra.mxu0 %v22
  %752 = vmatprep.subr.mxu0 0.0
  %753 = vmatpush1.msra.mxu0 %v21
  %754 = vmatprep.subr.mxu0 0.0
  %755 = vmatpush1.msra.mxu0 %v20
  %756 = vmatprep.subr.mxu0 0.0
  %757 = vmatpush1.msra.mxu0 %v19
  %758 = vmatprep.subr.mxu0 0.0
  %759 = vmatpush1.msra.mxu0 %v18
  %760 = vmatprep.subr.mxu0 0.0
  %761 = vmatpush2.msra.mxu0 0.0
  %762 = vmatprep.subr.mxu0 0.0
  %763 = vmatpush2.msra.mxu0 0.0
  %764 = vmatprep.subr.mxu0 0.0
  %765 = vmatpush2.msra.mxu0 0.0
  %766 = vmatprep.subr.mxu0 0.0
  %767 = vmatpush2.msra.mxu0 0.0
  %768 = vmatprep.subr.mxu0 0.0
  %769 = vmatpush2.msra.mxu0 0.0
  %770 = vmatprep.subr.mxu0 0.0
  %771 = vmatpush2.msra.mxu0 0.0
  %772 = vmatprep.subr.mxu0 0.0
  %773 = vmatpush2.msra.mxu0 0.0
  %774 = vmatprep.subr.mxu0 0.0
  %775 = vmatpush2.msra.mxu0 0.0
  %776 = vmatprep.subr.mxu0 0.0
  %777 = vmatpush2.msra.mxu0 0.0
  %778 = vmatprep.subr.mxu0 0.0
  %779 = vmatpush2.msra.mxu0 0.0
  %780 = vmatprep.subr.mxu0 0.0
  %781 = vmatpush2.msra.mxu0 0.0
  %782 = vmatprep.subr.mxu0 0.0
  %783 = vmatpush2.msra.mxu0 0.0
  %784 = vmatprep.subr.mxu0 0.0
  %785 = vmatpush2.msra.mxu0 0.0
  %786 = vmatprep.subr.mxu0 0.0
  %787 = vmatpush2.msra.mxu0 0.0
  %788 = vmatprep.subr.mxu0 0.0
  %789 = vmatpush2.msra.mxu0 0.0
  %790 = vmatprep.subr.mxu0 0.0
  %791 = vmatpush2.msra.mxu0 0.0
  %792 = vmatprep.mubr.f32.mxu0 0.0
  %793 = vmatmul.mubr.f32.gmra.mxu0 %v726
  %v794 = vpop.f32.mrf.mxu0
  %v795 = vadd.f32 %v114, %v794
  %v796 = vpop.f32.mrf.mxu0
  %797 = vdwg.mxu0
  %v798 = vtanh.pop %v795
  %799 = vst.msk [vmem:[%s2 + $0x1c] sm:$0xf] %vm222, %v798
  // Predicated region
  $region10: #{rev1_forward.1} parent=0 // pred_check
    _
  $region11: #{rev1_forward.1} parent=0 // pred_check_branch
    %801 = sbr.rel (0) target = $region13
  $region12: #{rev1_forward.1} parent=0 // pred_region
    _
  $region13: #{rev1_forward.1} parent=0 // pred_fallthru
    _
  // Predicated region
  $region14: #{rev1_forward.1} parent=0 // pred_check
    _
  $region15: #{rev1_forward.1} parent=0 // pred_check_branch
    %803 = sbr.rel (0) target = $region17
  $region16: #{rev1_forward.1} parent=0 // pred_region
    _
  $region17: #{rev1_forward.1} parent=0 // pred_fallthru
    _

</llo_original>
